<compile_context>
chip_gen: v7x
topology: tpu7x:2x2x1
jax: 0.10.0
libtpu: 0.0.40
codegen_flags: <defaults>
</compile_context>

<pallas_src>
from functools import partial

import jax
import jax.numpy as jnp
from jax import lax
from jax.experimental import pallas as pl
from jax.experimental.pallas import tpu as pltpu

_MAX_BLOCK_BYTES = 4 * 1024 * 1024   # per x block (Pallas double-buffers -> ~8 MiB)


def _round_up(v, m):
    return ((v + m - 1) // m) * m


def _int_pow(x, n):
    """x**n for a static positive int n via exponentiation by squaring (pure VPU)."""
    result = None
    base = x
    while n > 0:
        if n & 1:
            result = base if result is None else result * base
        n >>= 1
        if n:
            base = base * base
    return result


def _static_int_p(p):
    """Return p as a Python int if it is a trace-time constant integer in [1, 8]."""
    try:
        val = float(jnp.asarray(p).reshape(-1)[0])
    except Exception:                  # traced value (jit/grad) -> no static fast path
        return None
    ip = int(round(val))
    if abs(val - ip) < 1e-12 and 1 <= ip <= 8:
        return ip
    return None


def _gem_kernel(p_ref, x_ref, o_ref, acc_ref, *, eps, inv_hw, hw, tw, int_p):
    k = pl.program_id(1)

    @pl.when(k == 0)
    def _init():
        acc_ref[...] = jnp.zeros_like(acc_ref)

    # clamp(min=eps) -> pow(p); accumulate in f32 regardless of the input dtype.
    xc = jnp.maximum(x_ref[...].astype(jnp.float32), eps)
    if int_p is not None:
        xp = _int_pow(xc, int_p)                 # exact, pure VPU (no EUP in hot loop)
    else:
        xp = jnp.exp(jnp.log(xc) * p_ref[0])     # generic p: EUP log/exp

    if hw % tw != 0:                             # mask the ragged last HW tile
        lane = lax.broadcasted_iota(jnp.int32, xp.shape, dimension=1)
        xp = jnp.where(k * tw + lane < hw, xp, 0.0)

    acc_ref[...] += jnp.sum(xp, axis=-1, keepdims=True)

    @pl.when(k == pl.num_programs(1) - 1)
    def _finalize():
        m = acc_ref[...] * inv_hw                                    # global avg pool
        o_ref[...] = jnp.exp(jnp.log(m) / p_ref[0]).astype(o_ref.dtype)   # m^(1/p)


def gem(x, p, eps=1e-6):
    """GeM pooling: avg_pool2d(x.clamp(min=eps)^p, (H, W))^(1/p) -> (B, C, 1, 1)."""
    B, C, H, W = x.shape
    BC, HW = B * C, H * W
    xm = x.reshape(BC, HW)                        # contiguous reshape, native dtype
    itemsize = xm.dtype.itemsize

    # Lane tile over the H*W reduction: full extent when small, else 128-aligned tiles.
    tw = HW if HW <= 2048 else 2048
    num_hw = pl.cdiv(HW, tw)

    # Row tile: as large as the VMEM budget allows, a multiple of 8 sublanes.
    block_budget = max(8 * 128, _MAX_BLOCK_BYTES // itemsize)
    rb = max(8, min(1024, (block_budget // tw) // 8 * 8, _round_up(BC, 8)))
    if BC > 8 and pl.cdiv(BC, rb) < 2:            # v7x megacore: >=2 parallel steps
        rb = _round_up(pl.cdiv(BC, 2), 8)
    num_rows = pl.cdiv(BC, rb)

    p_arr = jnp.asarray(p, jnp.float32).reshape((1,))
    int_p = _static_int_p(p)

    cost = pl.CostEstimate(
        flops=3 * BC * HW,
        transcendentals=(0 if int_p is not None else 2 * BC * HW) + 2 * BC,
        bytes_accessed=BC * HW * itemsize + BC * x.dtype.itemsize,
    )

    out = pl.pallas_call(
        partial(_gem_kernel, eps=float(eps), inv_hw=1.0 / HW, hw=HW, tw=tw, int_p=int_p),
        grid=(num_rows, num_hw),
        in_specs=[
            pl.BlockSpec(memory_space=pltpu.MemorySpace.SMEM),        # p: scalar in SMEM
            pl.BlockSpec((rb, tw), lambda i, k: (i, k)),              # x: row/lane tile
        ],
        out_specs=pl.BlockSpec((rb, 1), lambda i, k: (i, 0)),
        out_shape=jax.ShapeDtypeStruct((BC, 1), x.dtype),
        scratch_shapes=[pltpu.VMEM((rb, 1), jnp.float32)],
        compiler_params=pltpu.CompilerParams(
            dimension_semantics=("parallel", "arbitrary")),
        cost_estimate=cost,
    )(p_arr, xm)

    return out.reshape(B, C, 1, 1)


if __name__ == "__main__":
    key = jax.random.PRNGKey(0)
    xkey, _ = jax.random.split(key)

    B, C, H, W = 2, 4, 16, 16
    x = jax.random.normal(xkey, (B, C, H, W), jnp.float32)
    eps = 1e-6

    # Default GeM: learnable p initialized to 3 (hits the integer-p VPU fast path).
    p = jnp.full((1,), 3.0, jnp.float32)
    out = jax.block_until_ready(gem(x, p, eps))
    assert out.shape == (B, C, 1, 1), out.shape
    ref = jnp.mean(jnp.maximum(x, eps) ** p[0], axis=(2, 3), keepdims=True) ** (1.0 / p[0])
    assert jnp.allclose(out, ref, rtol=1e-4, atol=1e-6), "integer-p path mismatch"

    # Non-integer p exercises the generic exp(p*log(x)) EUP path.
    p2 = jnp.full((1,), 2.5, jnp.float32)
    out2 = jax.block_until_ready(gem(x, p2, eps))
    ref2 = jnp.mean(jnp.maximum(x, eps) ** p2[0], axis=(2, 3), keepdims=True) ** (1.0 / p2[0])
    assert jnp.allclose(out2, ref2, rtol=1e-4, atol=1e-6), "generic-p path mismatch"

    print("KERNEL_OK")
</pallas_src>

<mosaic_0001>
module attributes {stable_mosaic.version = 11 : i64} {
  func.func @_gem_kernel(%arg0: i32, %arg1: i32, %arg2: memref<1xf32, #tpu.memory_space<smem>>, %arg3: memref<8x256xf32, #tpu.memory_space<vmem>>, %arg4: memref<8x1xf32, #tpu.memory_space<vmem>>, %arg5: memref<8x1xf32, #tpu.memory_space<vmem>>) attributes {dimension_semantics = [#tpu.dimension_semantics<parallel>, #tpu.dimension_semantics<arbitrary>], iteration_bounds = array<i64: 1, 1>, scalar_prefetch = 0 : i64, scratch_operands = 1 : i64, tpu.core_type = #tpu.core_type<tc>, window_params = [{transform_indices = @transform_0, window_bounds = array<i64: 1>}, {transform_indices = @transform_1, window_bounds = array<i64: 8, 256>}, {transform_indices = @transform_2, window_bounds = array<i64: 8, 1>}]} {
    %c0_i32 = arith.constant 0 : i32
    %0 = arith.cmpi eq, %arg1, %c0_i32 : i32
    %1 = arith.extui %0 : i1 to i32
    %c0_i32_0 = arith.constant 0 : i32
    %2 = arith.cmpi ne, %1, %c0_i32_0 : i32
    scf.if %2 {
      %cst_9 = arith.constant 0.000000e+00 : f32
      %16 = vector.broadcast %cst_9 : f32 to vector<8x1xf32>
      %c0_10 = arith.constant 0 : index
      %c0_11 = arith.constant 0 : index
      %17 = vector.load %arg5[%c0_10, %c0_11] : memref<8x1xf32, #tpu.memory_space<vmem>>, vector<8x1xf32>
      tpu.vector_store %arg5[%c0_10, %c0_11], %16 {strides = array<i32>} : memref<8x1xf32, #tpu.memory_space<vmem>>, vector<8x1xf32>,
    } else {
    }
    %c0 = arith.constant 0 : index
    %c0_1 = arith.constant 0 : index
    %3 = vector.load %arg3[%c0, %c0_1] : memref<8x256xf32, #tpu.memory_space<vmem>>, vector<8x256xf32>
    %cst = arith.constant 9.99999997E-7 : f32
    %4 = vector.broadcast %cst : f32 to vector<8x256xf32>
    %5 = arith.maximumf %3, %4 : vector<8x256xf32>
    %6 = arith.mulf %5, %5 : vector<8x256xf32>
    %7 = arith.mulf %5, %6 : vector<8x256xf32>
    %c0_2 = arith.constant 0 : index
    %c0_3 = arith.constant 0 : index
    %8 = vector.load %arg5[%c0_2, %c0_3] : memref<8x1xf32, #tpu.memory_space<vmem>>, vector<8x1xf32>
    %cst_4 = arith.constant dense<0.000000e+00> : vector<8xf32>
    %9 = vector.multi_reduction <add>, %7, %cst_4 [1] : vector<8x256xf32> to vector<8xf32>
    %10 = vector.shape_cast %9 : vector<8xf32> to vector<8x1xf32>
    %11 = arith.addf %8, %10 : vector<8x1xf32>
    %c0_5 = arith.constant 0 : index
    %c0_6 = arith.constant 0 : index
    %12 = vector.load %arg5[%c0_5, %c0_6] : memref<8x1xf32, #tpu.memory_space<vmem>>, vector<8x1xf32>
    tpu.vector_store %arg5[%c0_5, %c0_6], %11 {strides = array<i32>} : memref<8x1xf32, #tpu.memory_space<vmem>>, vector<8x1xf32>,
    %c0_i32_7 = arith.constant 0 : i32
    %13 = arith.cmpi eq, %arg1, %c0_i32_7 : i32
    %14 = arith.extui %13 : i1 to i32
    %c0_i32_8 = arith.constant 0 : i32
    %15 = arith.cmpi ne, %14, %c0_i32_8 : i32
    scf.if %15 {
      %c0_9 = arith.constant 0 : index
      %c0_10 = arith.constant 0 : index
      %16 = vector.load %arg5[%c0_9, %c0_10] : memref<8x1xf32, #tpu.memory_space<vmem>>, vector<8x1xf32>
      %cst_11 = arith.constant 3.906250e-03 : f32
      %17 = vector.broadcast %cst_11 : f32 to vector<8x1xf32>
      %18 = arith.mulf %16, %17 : vector<8x1xf32>
      %19 = math.log %18 : vector<8x1xf32>
      %c0_12 = arith.constant 0 : index
      %20 = memref.load %arg2[%c0_12] : memref<1xf32, #tpu.memory_space<smem>>
      %21 = vector.broadcast %20 : f32 to vector<8x1xf32>
      %22 = arith.divf %19, %21 : vector<8x1xf32>
      %23 = math.exp %22 : vector<8x1xf32>
      %c0_13 = arith.constant 0 : index
      %c0_14 = arith.constant 0 : index
      %24 = vector.load %arg4[%c0_13, %c0_14] : memref<8x1xf32, #tpu.memory_space<vmem>>, vector<8x1xf32>
      tpu.vector_store %arg4[%c0_13, %c0_14], %23 {strides = array<i32>} : memref<8x1xf32, #tpu.memory_space<vmem>>, vector<8x1xf32>,
    } else {
    }
    return
  }
  func.func @transform_0(%arg0: i32, %arg1: i32) -> i32 {
    %c0_i32 = arith.constant 0 : i32
    %c0_i32_0 = arith.constant 0 : i32
    return %c0_i32 : i32
  }
  func.func @transform_1(%arg0: i32, %arg1: i32) -> (i32, i32) {
    %c0_i32 = arith.constant 0 : i32
    return %arg0, %arg1 : i32, i32
  }
  func.func @transform_2(%arg0: i32, %arg1: i32) -> (i32, i32) {
    %c0_i32 = arith.constant 0 : i32
    %c0_i32_0 = arith.constant 0 : i32
    return %arg0, %c0_i32 : i32, i32
  }
}

</mosaic_0001>

<llo_original>
// kernel: tpu_custom_call.1
$region0: #{tpu_custom_call.1}
  #allocation0 [shape = 'u32[]', space=smem, size = 0x4, offset = 0x4, fixed_abs, tag = 'smem constant byte address 0x4 - core index']
  #allocation1 [shape = 'u32[144,128]{1,0:T(1,128)}', space=vmem, size = 0x12000, scoped, tag = 'internal scratch']
  #allocation2 [shape = 'f32[8,1]{1,0:T(8,128)}', space=vmem, size = 0x1000, scoped, tag = 'scratch operand']
  #allocation3 [shape = 'f32[1]{0:T(128)S(6)}', space=smem, size = 0x200, scoped, tag = 'scoped memory for tpu_custom_call.1']
  %s0 = inlined_call_operand.<no memory space> [shape: f32[1], index: 0, kind: input, shape index: {}]
  %s1 = inlined_call_operand.hbm [shape: f32[8,256], index: 1, kind: input, shape index: {}]
  %s2 = inlined_call_operand.vmem [shape: f32[8,1], index: 2, kind: output, shape index: {}]
  %s3 = sld [smem:[#allocation0]]
  $region30: #{tpu_custom_call.1} parent=0
    _
  %s5 = ssub.s32 1, %s3
  %s6 = scalar_select 0, %s5, %s3
  %7 = sst [smem:[#allocation3]] %s0
  $region1: #{tpu_custom_call.1} parent=0
    #allocation4 [shape = 'u8[8192]{0}', space=vmem, size = 0x2000, scoped, tag = 'input window, operand 1, single buffered']
    #allocation5 [shape = 's32[1]{0}', space=sflag, size = 0x4, scoped, tag = 'scoped memory for tpu_custom_call.1']
    %8 = vsyncpa [#allocation5], 0
    // Predicated region
    $region2: #{tpu_custom_call.1} parent=1 // pred_check
      _
    $region3: #{tpu_custom_call.1} parent=1 // pred_check_branch
      %10 = sbr.rel (0) target = $region5
    $region4: #{tpu_custom_call.1} parent=1 // pred_region
      _
    $region5: #{tpu_custom_call.1} parent=1 // pred_fallthru
      _
    // Predicated region
    $region6: #{tpu_custom_call.1} parent=1 // pred_check
      _
    $region7: #{tpu_custom_call.1} parent=1 // pred_check_branch
      %12 = sbr.rel (0) target = $region9
    $region8: #{tpu_custom_call.1} parent=1 // pred_region
      %s14 = ssub.s32 256, 256
      %15 = vsyncadd [#allocation5], %s14
      %s17 = sshll.u32 [#allocation4], 4
      %s18 = int_to_ptr.vmem [resolvable:$true] %s17
      %20 = dma.hbm_to_vmem [thread:$0]  %s1, 256, %s18, [#allocation5]
    $region9: #{tpu_custom_call.1} parent=1 // pred_fallthru
      _
    // Predicated region
    $region10: #{tpu_custom_call.1} parent=1 // pred_check
      _
    $region11: #{tpu_custom_call.1} parent=1 // pred_check_branch
      %22 = sbr.rel (0) target = $region13
    $region12: #{tpu_custom_call.1} parent=1 // pred_region
      %23 = dma.done [#allocation5], 256
    $region13: #{tpu_custom_call.1} parent=1 // pred_fallthru
      _
    %p24 = scmp.eq.s32.totalorder 0, 0
    // Predicated region
    $region14: #{tpu_custom_call.1} parent=1 // pred_check
      %p25 = pneg %p24
    $region15: #{tpu_custom_call.1} parent=1 // pred_check_branch
      %27 = sbr.rel (%p25) target = $region17
    $region16: #{tpu_custom_call.1} parent=1 // pred_region
      %vm28 = vcmask 7168
      %29 = vst.msk [vmem:[#allocation2] sm:$0xff] %vm28, 0.0
    $region17: #{tpu_custom_call.1} parent=1 // pred_fallthru
      _
    %v30 = vld [vmem:[#allocation4] sm:$0xff]
    %v31 = vld [vmem:[#allocation4 + $0x8] sm:$0xff]
    %v32 = vmax.f32 %v30, 1e-06
    %v33 = vmax.f32 %v31, 1e-06
    %v34 = vmul.f32 %v32, %v32
    %v35 = vmul.f32 %v33, %v33
    %v36 = vmul.f32 %v32, %v34
    %v37 = vmul.f32 %v33, %v35
    %v38 = vld [vmem:[#allocation2] sm:$0xff]
    %v39 = vadd.f32 %v36, %v37
    %40 = vadd.xlane.f32.xlu0 %v39
    %v41 = vpop.xlane.xlu0 %40
    %v42 = vadd.f32 %v38, %v41
    %vm43 = vcmask 7168
    %44 = vst.msk [vmem:[#allocation2] sm:$0xff] %vm43, %v42
    // Predicated region
    $region18: #{tpu_custom_call.1} parent=1 // pred_check
      %p45 = pneg %p24
    $region19: #{tpu_custom_call.1} parent=1 // pred_check_branch
      %47 = sbr.rel (%p45) target = $region21
    $region20: #{tpu_custom_call.1} parent=1 // pred_region
      %v48 = vld [vmem:[#allocation2] sm:$0xff]
      %v49 = vmul.f32 %v48, 0.00390625
      %v50 = vlog2.pop %v49
      %v51 = vmul.f32 %v50, 0.6931472
      %s52 = sld [smem:[#allocation3]]
      %v53 = vstv %s52
      %v54 = vrcp.pop %v53
      %v55 = vmul.f32 %v51, %v54
      %v56 = vmul.f32 %v55, 1.442695
      %v57 = vpow.pop %v56
      %58 = vst.msk [vmem:[%s2] sm:$0xff] %vm43, %v57
    $region21: #{tpu_custom_call.1} parent=1 // pred_fallthru
      _
    // Predicated region
    $region22: #{tpu_custom_call.1} parent=1 // pred_check
      _
    $region23: #{tpu_custom_call.1} parent=1 // pred_check_branch
      %60 = sbr.rel (0) target = $region25
    $region24: #{tpu_custom_call.1} parent=1 // pred_region
      _
    $region25: #{tpu_custom_call.1} parent=1 // pred_fallthru
      _
    // Predicated region
    $region26: #{tpu_custom_call.1} parent=1 // pred_check
      _
    $region27: #{tpu_custom_call.1} parent=1 // pred_check_branch
      %62 = sbr.rel (0) target = $region29
    $region28: #{tpu_custom_call.1} parent=1 // pred_region
      _
    $region29: #{tpu_custom_call.1} parent=1 // pred_fallthru
      _
    %63 = vsyncpa [#allocation5], 1

</llo_original>
